<compile_context>
chip_gen: v7x
topology: tpu7x:2x2x1
jax: 0.10.0
libtpu: 0.0.40
codegen_flags: <defaults>
</compile_context>

<pallas_src>
import functools

import jax
import jax.numpy as jnp
from jax.experimental import pallas as pl
from jax.experimental.pallas import tpu as pltpu

LANES = 128                       # padded feature width used for the MXU matmuls
BIAS_ROWS = 8                     # sublane-aligned rows reserved per bias
LAYER_ROWS = LANES + BIAS_ROWS    # 136 rows per layer in the packed slab
NUM_LAYERS = 3
SLAB_ROWS = NUM_LAYERS * LAYER_ROWS  # 408


def actor_kernel(x_ref, p_ref, o_ref, *, use_bf16):
    """x_ref: (TB, state_dim) raw states. p_ref: (408,128) packed params.
    o_ref: (TB, action_dim) actions."""
    tb, sd = x_ref.shape
    ad = o_ref.shape[1]

    x = x_ref[...]
    if sd < LANES:
        # Lane-pad the states to 128 inside the kernel (zeros are numerically inert:
        # the corresponding weight rows in the slab are zero anyway).
        x = jnp.concatenate(
            [x, jnp.zeros((tb, LANES - sd), dtype=jnp.float32)], axis=1)

    def layer(h, idx):
        base = idx * LAYER_ROWS
        w = p_ref[base:base + LANES, :]                       # (128, 128) weight block
        b = p_ref[base + LANES:base + LANES + 1, :]           # (1, 128) bias row
        if use_bf16:
            z = jnp.dot(h.astype(jnp.bfloat16), w.astype(jnp.bfloat16),
                        preferred_element_type=jnp.float32)
        else:
            z = jnp.dot(h, w, preferred_element_type=jnp.float32)
        return z + b                                          # bias add stays f32 (VPU)

    h1 = jnp.maximum(layer(x, 0), 0.0)        # layer_1 + ReLU
    h2 = jnp.maximum(layer(h1, 1), 0.0)       # layer_2 + ReLU
    z3 = layer(h2, 2)                         # layer_3 pre-activation, (TB, 128)
    # tanh only on the action_dim lanes that are actually stored.
    o_ref[...] = jnp.tanh(z3[:, :ad]).astype(o_ref.dtype)


def pack_params(params):
    """Pack (in,out) weights and (1,out) biases into one zero-padded (408,128) slab.

    Call ONCE at init; the slab is what actor_forward consumes.
    """
    slab = jnp.zeros((SLAB_ROWS, LANES), dtype=jnp.float32)
    for l in range(NUM_LAYERS):
        w = params[f"w{l + 1}"].astype(jnp.float32)
        b = params[f"b{l + 1}"].astype(jnp.float32).reshape(1, -1)
        fan_in, fan_out = w.shape
        assert fan_in <= LANES and fan_out <= LANES
        base = l * LAYER_ROWS
        slab = slab.at[base:base + fan_in, :fan_out].set(w)
        slab = slab.at[base + LANES:base + LANES + 1, :fan_out].set(b)
    return slab


def _round_up(x, m):
    return (x + m - 1) // m * m


@functools.partial(jax.jit,
                   static_argnames=("action_dim", "block_rows", "use_bf16"))
def actor_forward(s, param_slab, *, action_dim, block_rows=512, use_bf16=False):
    """s: (B, state_dim) float32. param_slab: (408,128) from pack_params."""
    B, state_dim = s.shape
    assert state_dim <= LANES and action_dim <= LANES

    # Batch rows must be 8-aligned for the batch tile; pad only when needed (cheap,
    # and a no-op for the common aligned case).
    b_pad = _round_up(max(B, 1), 8)
    s32 = s.astype(jnp.float32)
    if b_pad != B:
        s32 = jnp.pad(s32, ((0, b_pad - B), (0, 0)))

    # Batch tile: at most block_rows, and capped so batches > 8 rows get >= 2 grid
    # steps (lets the "parallel" axis shard across both v7x TensorCores).
    if b_pad <= 8:
        tb = b_pad
    else:
        tb = min(block_rows, _round_up(pl.cdiv(b_pad, 2), 8))
    grid_steps = pl.cdiv(b_pad, tb)

    out = pl.pallas_call(
        functools.partial(actor_kernel, use_bf16=use_bf16),
        out_shape=jax.ShapeDtypeStruct((b_pad, action_dim), jnp.float32),
        grid=(grid_steps,),
        in_specs=[
            # Raw states streamed tile-by-tile; last dim == full array dim is legal.
            pl.BlockSpec((tb, state_dim), lambda i: (i, 0)),
            # Packed params, constant index_map -> VMEM-resident across the grid.
            pl.BlockSpec((SLAB_ROWS, LANES), lambda i: (0, 0)),
        ],
        out_specs=pl.BlockSpec((tb, action_dim), lambda i: (i, 0)),
        compiler_params=pltpu.CompilerParams(
            dimension_semantics=("parallel",),   # megacore sharding of batch (v7x)
        ),
        cost_estimate=pl.CostEstimate(
            flops=2 * b_pad * LANES * LANES * NUM_LAYERS,
            transcendentals=b_pad * action_dim,
            bytes_accessed=4 * (b_pad * state_dim
                                + SLAB_ROWS * LANES
                                + b_pad * action_dim),
        ),
    )(s32, param_slab)

    return out[:B] if b_pad != B else out


def init_params(key, state_dim, action_dim):
    """Mirror PyTorch nn.Linear init; weights stored transposed as (in, out)."""
    dims = [(state_dim, 60), (60, 40), (40, action_dim)]
    params = {}
    keys = jax.random.split(key, 2 * len(dims))
    for i, (fan_in, fan_out) in enumerate(dims):
        bound = 1.0 / jnp.sqrt(jnp.float32(fan_in))
        params[f"w{i + 1}"] = jax.random.uniform(
            keys[2 * i], (fan_in, fan_out), minval=-bound, maxval=bound, dtype=jnp.float32)
        params[f"b{i + 1}"] = jax.random.uniform(
            keys[2 * i + 1], (1, fan_out), minval=-bound, maxval=bound, dtype=jnp.float32)
    return params


def _reference(s, params):
    h = jnp.maximum(s @ params["w1"] + params["b1"], 0.0)
    h = jnp.maximum(h @ params["w2"] + params["b2"], 0.0)
    return jnp.tanh(h @ params["w3"] + params["b3"])


if __name__ == "__main__":
    key = jax.random.PRNGKey(0)
    k_param, k_state1, k_state2 = jax.random.split(key, 3)

    state_dim = 24
    action_dim = 8

    params = init_params(k_param, state_dim, action_dim)
    slab = pack_params(params)          # pack/pad once at init

    # Case 1: tiny acting batch (B=2) -> single grid step, f32 everywhere.
    s_small = jax.random.normal(k_state1, (2, state_dim), dtype=jnp.float32)
    a_small = jax.block_until_ready(
        actor_forward(s_small, slab, action_dim=action_dim))
    ref_small = _reference(s_small, params)
    assert a_small.shape == (2, action_dim)
    assert bool(jnp.all(jnp.abs(a_small) <= 1.0))
    assert bool(jnp.allclose(a_small, ref_small, atol=1e-5)), \
        float(jnp.max(jnp.abs(a_small - ref_small)))

    # Case 2: multi-step grid (B=32 -> 2 tiles of 16 rows), f32 path.
    s_big = jax.random.normal(k_state2, (32, state_dim), dtype=jnp.float32)
    a_big = jax.block_until_ready(
        actor_forward(s_big, slab, action_dim=action_dim))
    ref_big = _reference(s_big, params)
    assert a_big.shape == (32, action_dim)
    assert bool(jnp.allclose(a_big, ref_big, atol=1e-5)), \
        float(jnp.max(jnp.abs(a_big - ref_big)))

    # Case 3: bf16 MXU operands (v6e/v7x fast path); looser tolerance.
    a_bf16 = jax.block_until_ready(
        actor_forward(s_big, slab, action_dim=action_dim, use_bf16=True))
    assert bool(jnp.allclose(a_bf16, ref_big, atol=5e-2)), \
        float(jnp.max(jnp.abs(a_bf16 - ref_big)))

    print("KERNEL_OK")
</pallas_src>

<mosaic_0001>
module attributes {stable_mosaic.version = 11 : i64} {
  func.func @actor_kernel(%arg0: i32, %arg1: memref<8x24xf32, #tpu.memory_space<vmem>>, %arg2: memref<408x128xf32, #tpu.memory_space<vmem>>, %arg3: memref<8x8xf32, #tpu.memory_space<vmem>>) attributes {dimension_semantics = [#tpu.dimension_semantics<parallel>], iteration_bounds = array<i64: 1>, scalar_prefetch = 0 : i64, scratch_operands = 0 : i64, tpu.core_type = #tpu.core_type<tc>, window_params = [{transform_indices = @transform_0, window_bounds = array<i64: 8, 24>}, {pipeline_mode = #tpu.pipeline_mode<synchronous>, transform_indices = @transform_1, window_bounds = array<i64: 408, 128>}, {transform_indices = @transform_2, window_bounds = array<i64: 8, 8>}]} {
    %c0 = arith.constant 0 : index
    %c0_0 = arith.constant 0 : index
    %0 = vector.load %arg1[%c0, %c0_0] : memref<8x24xf32, #tpu.memory_space<vmem>>, vector<8x24xf32>
    %cst = arith.constant 0.000000e+00 : f32
    %1 = vector.broadcast %cst : f32 to vector<8x104xf32>
    %2 = tpu.concatenate %0, %1 in 1 : vector<8x24xf32>, vector<8x104xf32> -> vector<8x128xf32>
    %c0_1 = arith.constant 0 : index
    %c0_2 = arith.constant 0 : index
    %3 = vector.load %arg2[%c0_1, %c0_2] : memref<408x128xf32, #tpu.memory_space<vmem>>, vector<128x128xf32>
    %c128 = arith.constant 128 : index
    %c0_3 = arith.constant 0 : index
    %4 = vector.load %arg2[%c128, %c0_3] : memref<408x128xf32, #tpu.memory_space<vmem>>, vector<1x128xf32>
    %cst_4 = arith.constant dense<0.000000e+00> : vector<8x128xf32>
    %5 = tpu.matmul %2, %3, %cst_4 {dimension_numbers = #tpu.dot_dimension_numbers<[1], [0], [0], [1], [0, 0, 1, 1], [], []>} : vector<8x128xf32>, vector<128x128xf32>, vector<8x128xf32> -> vector<8x128xf32>
    %6 = vector.broadcast %4 : vector<1x128xf32> to vector<8x128xf32>
    %7 = arith.addf %5, %6 : vector<8x128xf32>
    %cst_5 = arith.constant 0.000000e+00 : f32
    %8 = vector.broadcast %cst_5 : f32 to vector<8x128xf32>
    %9 = arith.maximumf %7, %8 : vector<8x128xf32>
    %c136 = arith.constant 136 : index
    %c0_6 = arith.constant 0 : index
    %10 = vector.load %arg2[%c136, %c0_6] : memref<408x128xf32, #tpu.memory_space<vmem>>, vector<128x128xf32>
    %c264 = arith.constant 264 : index
    %c0_7 = arith.constant 0 : index
    %11 = vector.load %arg2[%c264, %c0_7] : memref<408x128xf32, #tpu.memory_space<vmem>>, vector<1x128xf32>
    %cst_8 = arith.constant dense<0.000000e+00> : vector<8x128xf32>
    %12 = tpu.matmul %9, %10, %cst_8 {dimension_numbers = #tpu.dot_dimension_numbers<[1], [0], [0], [1], [0, 0, 1, 1], [], []>} : vector<8x128xf32>, vector<128x128xf32>, vector<8x128xf32> -> vector<8x128xf32>
    %13 = vector.broadcast %11 : vector<1x128xf32> to vector<8x128xf32>
    %14 = arith.addf %12, %13 : vector<8x128xf32>
    %cst_9 = arith.constant 0.000000e+00 : f32
    %15 = vector.broadcast %cst_9 : f32 to vector<8x128xf32>
    %16 = arith.maximumf %14, %15 : vector<8x128xf32>
    %c272 = arith.constant 272 : index
    %c0_10 = arith.constant 0 : index
    %17 = vector.load %arg2[%c272, %c0_10] : memref<408x128xf32, #tpu.memory_space<vmem>>, vector<128x128xf32>
    %c400 = arith.constant 400 : index
    %c0_11 = arith.constant 0 : index
    %18 = vector.load %arg2[%c400, %c0_11] : memref<408x128xf32, #tpu.memory_space<vmem>>, vector<1x128xf32>
    %cst_12 = arith.constant dense<0.000000e+00> : vector<8x128xf32>
    %19 = tpu.matmul %16, %17, %cst_12 {dimension_numbers = #tpu.dot_dimension_numbers<[1], [0], [0], [1], [0, 0, 1, 1], [], []>} : vector<8x128xf32>, vector<128x128xf32>, vector<8x128xf32> -> vector<8x128xf32>
    %20 = vector.broadcast %18 : vector<1x128xf32> to vector<8x128xf32>
    %21 = arith.addf %19, %20 : vector<8x128xf32>
    %22 = vector.extract_strided_slice %21 {offsets = [0, 0], sizes = [8, 8], strides = [1, 1]} : vector<8x128xf32> to vector<8x8xf32>
    %23 = math.tanh %22 : vector<8x8xf32>
    %c0_13 = arith.constant 0 : index
    %c0_14 = arith.constant 0 : index
    %24 = vector.load %arg3[%c0_13, %c0_14] : memref<8x8xf32, #tpu.memory_space<vmem>>, vector<8x8xf32>
    tpu.vector_store %arg3[%c0_13, %c0_14], %23 {strides = array<i32>} : memref<8x8xf32, #tpu.memory_space<vmem>>, vector<8x8xf32>,
    return
  }
  func.func @transform_0(%arg0: i32) -> (i32, i32) {
    %c0_i32 = arith.constant 0 : i32
    %c0_i32_0 = arith.constant 0 : i32
    return %arg0, %c0_i32 : i32, i32
  }
  func.func @transform_1(%arg0: i32) -> (i32, i32) {
    %c0_i32 = arith.constant 0 : i32
    %c0_i32_0 = arith.constant 0 : i32
    %c0_i32_1 = arith.constant 0 : i32
    return %c0_i32, %c0_i32_0 : i32, i32
  }
  func.func @transform_2(%arg0: i32) -> (i32, i32) {
    %c0_i32 = arith.constant 0 : i32
    %c0_i32_0 = arith.constant 0 : i32
    return %arg0, %c0_i32 : i32, i32
  }
}

</mosaic_0001>

<llo_original>
// kernel: actor_forward.1
$region0: #{actor_forward.1}
  #allocation0 [shape = 'u32[]', space=smem, size = 0x4, offset = 0x4, fixed_abs, tag = 'smem constant byte address 0x4 - core index']
  #allocation1 [shape = 'u32[144,128]{1,0:T(1,128)}', space=vmem, size = 0x12000, scoped, tag = 'internal scratch']
  %s0 = inlined_call_operand.vmem [shape: f32[8,24], index: 0, kind: input, shape index: {}]
  %s1 = inlined_call_operand.hbm [shape: f32[408,128], index: 1, kind: input, shape index: {}]
  %s2 = inlined_call_operand.vmem [shape: f32[8,8], index: 2, kind: output, shape index: {}]
  %s3 = sld [smem:[#allocation0]]
  $region22: #{actor_forward.1} parent=0
    _
  %s5 = ssub.s32 1, %s3
  %s6 = scalar_select 0, %s5, %s3
  $region1: #{actor_forward.1} parent=0
    #allocation2 [shape = 'u8[208896]{0}', space=vmem, size = 0x33000, scoped, tag = 'input window, operand 1, single buffered']
    #allocation3 [shape = 's32[1]{0}', space=sflag, size = 0x4, scoped, tag = 'scoped memory for actor_forward.1']
    %7 = vsyncpa [#allocation3], 0
    // Predicated region
    $region2: #{actor_forward.1} parent=1 // pred_check
      _
    $region3: #{actor_forward.1} parent=1 // pred_check_branch
      %9 = sbr.rel (0) target = $region5
    $region4: #{actor_forward.1} parent=1 // pred_region
      _
    $region5: #{actor_forward.1} parent=1 // pred_fallthru
      _
    // Predicated region
    $region6: #{actor_forward.1} parent=1 // pred_check
      _
    $region7: #{actor_forward.1} parent=1 // pred_check_branch
      %11 = sbr.rel (0) target = $region9
    $region8: #{actor_forward.1} parent=1 // pred_region
      %s13 = ssub.s32 6528, 6528
      %14 = vsyncadd [#allocation3], %s13
      %s15 = sshll.u32 [#allocation2], 4
      %s16 = int_to_ptr.vmem [resolvable:$true] %s15
      %21 = dma.hbm_to_vmem [thread:$0]  %s1, 6528, %s16, [#allocation3], 128, 128, 8
    $region9: #{actor_forward.1} parent=1 // pred_fallthru
      _
    // Predicated region
    $region10: #{actor_forward.1} parent=1 // pred_check
      _
    $region11: #{actor_forward.1} parent=1 // pred_check_branch
      %23 = sbr.rel (0) target = $region13
    $region12: #{actor_forward.1} parent=1 // pred_region
      %24 = dma.done [#allocation3], 6528
    $region13: #{actor_forward.1} parent=1 // pred_fallthru
      _
    %v25 = vld [vmem:[%s0] sm:$0xff]
    %vm26 = vcmask 195584
    %v27 = vsel %vm26, %v25, 0.0
    %v28 = vld [vmem:[#allocation2] sm:$0xff]
    %v29 = vld [vmem:[#allocation2 + $0x8] sm:$0xff]
    %v30 = vld [vmem:[#allocation2 + $0x10] sm:$0xff]
    %v31 = vld [vmem:[#allocation2 + $0x18] sm:$0xff]
    %v32 = vld [vmem:[#allocation2 + $0x20] sm:$0xff]
    %v33 = vld [vmem:[#allocation2 + $0x28] sm:$0xff]
    %v34 = vld [vmem:[#allocation2 + $0x30] sm:$0xff]
    %v35 = vld [vmem:[#allocation2 + $0x38] sm:$0xff]
    %v36 = vld [vmem:[#allocation2 + $0x40] sm:$0xff]
    %v37 = vld [vmem:[#allocation2 + $0x48] sm:$0xff]
    %v38 = vld [vmem:[#allocation2 + $0x50] sm:$0xff]
    %v39 = vld [vmem:[#allocation2 + $0x58] sm:$0xff]
    %v40 = vld [vmem:[#allocation2 + $0x60] sm:$0xff]
    %v41 = vld [vmem:[#allocation2 + $0x68] sm:$0xff]
    %v42 = vld [vmem:[#allocation2 + $0x70] sm:$0xff]
    %v43 = vld [vmem:[#allocation2 + $0x78] sm:$0xff]
    %v44 = vld [vmem:[#allocation2 + $0x80] sm:$0x1]
    %v45 = vlaneseq
    %v46 = vshrl.u32 %v45, 7
    %v47 = vsub.s32 0, %v46
    %v48 = vrot.slane %v44, %v47
    %49 = vmatprep.subr.mxu0 0.0
    %50 = vmatpush1.msra.mxu0 %v28
    %51 = vmatprep.subr.mxu0 0.0
    %52 = vmatpush1.msra.mxu0 %v29
    %53 = vmatprep.subr.mxu0 0.0
    %54 = vmatpush1.msra.mxu0 %v30
    %55 = vmatprep.subr.mxu0 0.0
    %56 = vmatpush1.msra.mxu0 %v31
    %57 = vmatprep.subr.mxu0 0.0
    %58 = vmatpush1.msra.mxu0 %v32
    %59 = vmatprep.subr.mxu0 0.0
    %60 = vmatpush1.msra.mxu0 %v33
    %61 = vmatprep.subr.mxu0 0.0
    %62 = vmatpush1.msra.mxu0 %v34
    %63 = vmatprep.subr.mxu0 0.0
    %64 = vmatpush1.msra.mxu0 %v35
    %65 = vmatprep.subr.mxu0 0.0
    %66 = vmatpush1.msra.mxu0 %v36
    %67 = vmatprep.subr.mxu0 0.0
    %68 = vmatpush1.msra.mxu0 %v37
    %69 = vmatprep.subr.mxu0 0.0
    %70 = vmatpush1.msra.mxu0 %v38
    %71 = vmatprep.subr.mxu0 0.0
    %72 = vmatpush1.msra.mxu0 %v39
    %73 = vmatprep.subr.mxu0 0.0
    %74 = vmatpush1.msra.mxu0 %v40
    %75 = vmatprep.subr.mxu0 0.0
    %76 = vmatpush1.msra.mxu0 %v41
    %77 = vmatprep.subr.mxu0 0.0
    %78 = vmatpush1.msra.mxu0 %v42
    %79 = vmatprep.subr.mxu0 0.0
    %80 = vmatpush1.msra.mxu0 %v43
    %81 = vmatprep.subr.mxu0 0.0
    %82 = vmatpush1.msra.mxu0 0.0
    %83 = vmatprep.subr.mxu0 0.0
    %84 = vmatpush1.msra.mxu0 0.0
    %85 = vmatprep.subr.mxu0 0.0
    %86 = vmatpush1.msra.mxu0 0.0
    %87 = vmatprep.subr.mxu0 0.0
    %88 = vmatpush1.msra.mxu0 0.0
    %89 = vmatprep.subr.mxu0 0.0
    %90 = vmatpush1.msra.mxu0 0.0
    %91 = vmatprep.subr.mxu0 0.0
    %92 = vmatpush1.msra.mxu0 0.0
    %93 = vmatprep.subr.mxu0 0.0
    %94 = vmatpush1.msra.mxu0 0.0
    %95 = vmatprep.subr.mxu0 0.0
    %96 = vmatpush1.msra.mxu0 0.0
    %97 = vmatprep.subr.mxu0 0.0
    %98 = vmatpush1.msra.mxu0 0.0
    %99 = vmatprep.subr.mxu0 0.0
    %100 = vmatpush1.msra.mxu0 0.0
    %101 = vmatprep.subr.mxu0 0.0
    %102 = vmatpush1.msra.mxu0 0.0
    %103 = vmatprep.subr.mxu0 0.0
    %104 = vmatpush1.msra.mxu0 0.0
    %105 = vmatprep.subr.mxu0 0.0
    %106 = vmatpush1.msra.mxu0 0.0
    %107 = vmatprep.subr.mxu0 0.0
    %108 = vmatpush1.msra.mxu0 0.0
    %109 = vmatprep.subr.mxu0 0.0
    %110 = vmatpush1.msra.mxu0 0.0
    %111 = vmatprep.subr.mxu0 0.0
    %112 = vmatpush1.msra.mxu0 0.0
    %113 = vmatprep.mubr.f32.mxu0 0.0
    %114 = vmatmul.mubr.f32.gmra.mrb[0].mxu0 %v27
    %v115 = vpop.f32.mrb[0].mxu0
    %v116 = vadd.f32 %v48, %v115
    %v117 = vpop.f32.mrb[0].mxu0
    %118 = vdwg.mxu0
    %v119 = vmax.f32 %v116, 0.0
    %v120 = vld [vmem:[#allocation2 + $0x88] sm:$0xff]
    %v121 = vld [vmem:[#allocation2 + $0x90] sm:$0xff]
    %v122 = vld [vmem:[#allocation2 + $0x98] sm:$0xff]
    %v123 = vld [vmem:[#allocation2 + $0xa0] sm:$0xff]
    %v124 = vld [vmem:[#allocation2 + $0xa8] sm:$0xff]
    %v125 = vld [vmem:[#allocation2 + $0xb0] sm:$0xff]
    %v126 = vld [vmem:[#allocation2 + $0xb8] sm:$0xff]
    %v127 = vld [vmem:[#allocation2 + $0xc0] sm:$0xff]
    %v128 = vld [vmem:[#allocation2 + $0xc8] sm:$0xff]
    %v129 = vld [vmem:[#allocation2 + $0xd0] sm:$0xff]
    %v130 = vld [vmem:[#allocation2 + $0xd8] sm:$0xff]
    %v131 = vld [vmem:[#allocation2 + $0xe0] sm:$0xff]
    %v132 = vld [vmem:[#allocation2 + $0xe8] sm:$0xff]
    %v133 = vld [vmem:[#allocation2 + $0xf0] sm:$0xff]
    %v134 = vld [vmem:[#allocation2 + $0xf8] sm:$0xff]
    %v135 = vld [vmem:[#allocation2 + $0x100] sm:$0xff]
    %v136 = vld [vmem:[#allocation2 + $0x108] sm:$0x1]
    %v137 = vlaneseq
    %v138 = vshrl.u32 %v137, 7
    %v139 = vsub.s32 0, %v138
    %v140 = vrot.slane %v136, %v139
    %141 = vmatprep.subr.mxu0 0.0
    %142 = vmatpush1.msra.mxu0 %v120
    %143 = vmatprep.subr.mxu0 0.0
    %144 = vmatpush1.msra.mxu0 %v121
    %145 = vmatprep.subr.mxu0 0.0
    %146 = vmatpush1.msra.mxu0 %v122
    %147 = vmatprep.subr.mxu0 0.0
    %148 = vmatpush1.msra.mxu0 %v123
    %149 = vmatprep.subr.mxu0 0.0
    %150 = vmatpush1.msra.mxu0 %v124
    %151 = vmatprep.subr.mxu0 0.0
    %152 = vmatpush1.msra.mxu0 %v125
    %153 = vmatprep.subr.mxu0 0.0
    %154 = vmatpush1.msra.mxu0 %v126
    %155 = vmatprep.subr.mxu0 0.0
    %156 = vmatpush1.msra.mxu0 %v127
    %157 = vmatprep.subr.mxu0 0.0
    %158 = vmatpush1.msra.mxu0 %v128
    %159 = vmatprep.subr.mxu0 0.0
    %160 = vmatpush1.msra.mxu0 %v129
    %161 = vmatprep.subr.mxu0 0.0
    %162 = vmatpush1.msra.mxu0 %v130
    %163 = vmatprep.subr.mxu0 0.0
    %164 = vmatpush1.msra.mxu0 %v131
    %165 = vmatprep.subr.mxu0 0.0
    %166 = vmatpush1.msra.mxu0 %v132
    %167 = vmatprep.subr.mxu0 0.0
    %168 = vmatpush1.msra.mxu0 %v133
    %169 = vmatprep.subr.mxu0 0.0
    %170 = vmatpush1.msra.mxu0 %v134
    %171 = vmatprep.subr.mxu0 0.0
    %172 = vmatpush1.msra.mxu0 %v135
    %173 = vmatprep.subr.mxu0 0.0
    %174 = vmatpush1.msra.mxu0 0.0
    %175 = vmatprep.subr.mxu0 0.0
    %176 = vmatpush1.msra.mxu0 0.0
    %177 = vmatprep.subr.mxu0 0.0
    %178 = vmatpush1.msra.mxu0 0.0
    %179 = vmatprep.subr.mxu0 0.0
    %180 = vmatpush1.msra.mxu0 0.0
    %181 = vmatprep.subr.mxu0 0.0
    %182 = vmatpush1.msra.mxu0 0.0
    %183 = vmatprep.subr.mxu0 0.0
    %184 = vmatpush1.msra.mxu0 0.0
    %185 = vmatprep.subr.mxu0 0.0
    %186 = vmatpush1.msra.mxu0 0.0
    %187 = vmatprep.subr.mxu0 0.0
    %188 = vmatpush1.msra.mxu0 0.0
    %189 = vmatprep.subr.mxu0 0.0
    %190 = vmatpush1.msra.mxu0 0.0
    %191 = vmatprep.subr.mxu0 0.0
    %192 = vmatpush1.msra.mxu0 0.0
    %193 = vmatprep.subr.mxu0 0.0
    %194 = vmatpush1.msra.mxu0 0.0
    %195 = vmatprep.subr.mxu0 0.0
    %196 = vmatpush1.msra.mxu0 0.0
    %197 = vmatprep.subr.mxu0 0.0
    %198 = vmatpush1.msra.mxu0 0.0
    %199 = vmatprep.subr.mxu0 0.0
    %200 = vmatpush1.msra.mxu0 0.0
    %201 = vmatprep.subr.mxu0 0.0
    %202 = vmatpush1.msra.mxu0 0.0
    %203 = vmatprep.subr.mxu0 0.0
    %204 = vmatpush1.msra.mxu0 0.0
    %205 = vmatprep.mubr.f32.mxu0 0.0
    %206 = vmatmul.mubr.f32.gmra.mrb[0].mxu0 %v119
    %v207 = vpop.f32.mrb[0].mxu0
    %v208 = vadd.f32 %v140, %v207
    %v209 = vpop.f32.mrb[0].mxu0
    %210 = vdwg.mxu0
    %v211 = vmax.f32 %v208, 0.0
    %v212 = vld [vmem:[#allocation2 + $0x110] sm:$0xff]
    %v213 = vld [vmem:[#allocation2 + $0x118] sm:$0xff]
    %v214 = vld [vmem:[#allocation2 + $0x120] sm:$0xff]
    %v215 = vld [vmem:[#allocation2 + $0x128] sm:$0xff]
    %v216 = vld [vmem:[#allocation2 + $0x130] sm:$0xff]
    %v217 = vld [vmem:[#allocation2 + $0x138] sm:$0xff]
    %v218 = vld [vmem:[#allocation2 + $0x140] sm:$0xff]
    %v219 = vld [vmem:[#allocation2 + $0x148] sm:$0xff]
    %v220 = vld [vmem:[#allocation2 + $0x150] sm:$0xff]
    %v221 = vld [vmem:[#allocation2 + $0x158] sm:$0xff]
    %v222 = vld [vmem:[#allocation2 + $0x160] sm:$0xff]
    %v223 = vld [vmem:[#allocation2 + $0x168] sm:$0xff]
    %v224 = vld [vmem:[#allocation2 + $0x170] sm:$0xff]
    %v225 = vld [vmem:[#allocation2 + $0x178] sm:$0xff]
    %v226 = vld [vmem:[#allocation2 + $0x180] sm:$0xff]
    %v227 = vld [vmem:[#allocation2 + $0x188] sm:$0xff]
    %v228 = vld [vmem:[#allocation2 + $0x190] sm:$0x1]
    %v229 = vlaneseq
    %v230 = vshrl.u32 %v229, 7
    %v231 = vsub.s32 0, %v230
    %v232 = vrot.slane %v228, %v231
    %233 = vmatprep.subr.mxu0 0.0
    %234 = vmatpush1.msra.mxu0 %v212
    %235 = vmatprep.subr.mxu0 0.0
    %236 = vmatpush1.msra.mxu0 %v213
    %237 = vmatprep.subr.mxu0 0.0
    %238 = vmatpush1.msra.mxu0 %v214
    %239 = vmatprep.subr.mxu0 0.0
    %240 = vmatpush1.msra.mxu0 %v215
    %241 = vmatprep.subr.mxu0 0.0
    %242 = vmatpush1.msra.mxu0 %v216
    %243 = vmatprep.subr.mxu0 0.0
    %244 = vmatpush1.msra.mxu0 %v217
    %245 = vmatprep.subr.mxu0 0.0
    %246 = vmatpush1.msra.mxu0 %v218
    %247 = vmatprep.subr.mxu0 0.0
    %248 = vmatpush1.msra.mxu0 %v219
    %249 = vmatprep.subr.mxu0 0.0
    %250 = vmatpush1.msra.mxu0 %v220
    %251 = vmatprep.subr.mxu0 0.0
    %252 = vmatpush1.msra.mxu0 %v221
    %253 = vmatprep.subr.mxu0 0.0
    %254 = vmatpush1.msra.mxu0 %v222
    %255 = vmatprep.subr.mxu0 0.0
    %256 = vmatpush1.msra.mxu0 %v223
    %257 = vmatprep.subr.mxu0 0.0
    %258 = vmatpush1.msra.mxu0 %v224
    %259 = vmatprep.subr.mxu0 0.0
    %260 = vmatpush1.msra.mxu0 %v225
    %261 = vmatprep.subr.mxu0 0.0
    %262 = vmatpush1.msra.mxu0 %v226
    %263 = vmatprep.subr.mxu0 0.0
    %264 = vmatpush1.msra.mxu0 %v227
    %265 = vmatprep.subr.mxu0 0.0
    %266 = vmatpush1.msra.mxu0 0.0
    %267 = vmatprep.subr.mxu0 0.0
    %268 = vmatpush1.msra.mxu0 0.0
    %269 = vmatprep.subr.mxu0 0.0
    %270 = vmatpush1.msra.mxu0 0.0
    %271 = vmatprep.subr.mxu0 0.0
    %272 = vmatpush1.msra.mxu0 0.0
    %273 = vmatprep.subr.mxu0 0.0
    %274 = vmatpush1.msra.mxu0 0.0
    %275 = vmatprep.subr.mxu0 0.0
    %276 = vmatpush1.msra.mxu0 0.0
    %277 = vmatprep.subr.mxu0 0.0
    %278 = vmatpush1.msra.mxu0 0.0
    %279 = vmatprep.subr.mxu0 0.0
    %280 = vmatpush1.msra.mxu0 0.0
    %281 = vmatprep.subr.mxu0 0.0
    %282 = vmatpush1.msra.mxu0 0.0
    %283 = vmatprep.subr.mxu0 0.0
    %284 = vmatpush1.msra.mxu0 0.0
    %285 = vmatprep.subr.mxu0 0.0
    %286 = vmatpush1.msra.mxu0 0.0
    %287 = vmatprep.subr.mxu0 0.0
    %288 = vmatpush1.msra.mxu0 0.0
    %289 = vmatprep.subr.mxu0 0.0
    %290 = vmatpush1.msra.mxu0 0.0
    %291 = vmatprep.subr.mxu0 0.0
    %292 = vmatpush1.msra.mxu0 0.0
    %293 = vmatprep.subr.mxu0 0.0
    %294 = vmatpush1.msra.mxu0 0.0
    %295 = vmatprep.subr.mxu0 0.0
    %296 = vmatpush1.msra.mxu0 0.0
    %297 = vmatprep.mubr.f32.mxu0 0.0
    %298 = vmatmul.mubr.f32.gmra.mrb[0].mxu0 %v211
    %v299 = vpop.f32.mrb[0].mxu0
    %v300 = vadd.f32 %v232, %v299
    %v301 = vpop.f32.mrb[0].mxu0
    %302 = vdwg.mxu0
    %v303 = vtanh.pop %v300
    %vm304 = vcmask 64512
    %305 = vst.msk [vmem:[%s2] sm:$0xff] %vm304, %v303
    // Predicated region
    $region14: #{actor_forward.1} parent=1 // pred_check
      _
    $region15: #{actor_forward.1} parent=1 // pred_check_branch
      %307 = sbr.rel (0) target = $region17
    $region16: #{actor_forward.1} parent=1 // pred_region
      _
    $region17: #{actor_forward.1} parent=1 // pred_fallthru
      _
    // Predicated region
    $region18: #{actor_forward.1} parent=1 // pred_check
      _
    $region19: #{actor_forward.1} parent=1 // pred_check_branch
      %309 = sbr.rel (0) target = $region21
    $region20: #{actor_forward.1} parent=1 // pred_region
      _
    $region21: #{actor_forward.1} parent=1 // pred_fallthru
      _
    %310 = vsyncpa [#allocation3], 1

</llo_original>
